<compile_context>
chip_gen: v6e
topology: v6e:2x2x1
jax: 0.10.0
libtpu: 0.0.40
codegen_flags: <defaults>
</compile_context>

<pallas_src>
import jax
import jax.numpy as jnp
from jax.experimental import pallas as pl
from jax.experimental.pallas import tpu as pltpu

IN_F = 2
OUT_F = 1
TILE_N = 512  # lane-dense tile along the batch dim for the gridded (large-N) path


def linear_kernel(x_ref, p_ref, o_ref):
    # x_ref: (2, TN) f32 VMEM  -- features on sublanes, batch rows on the 128-lane axis
    # p_ref: (3,)    f32 SMEM  -- merged [w0, w1, b] scalars
    # o_ref: (1, TN) f32 VMEM  -- lane-dense output (unmasked full-lane stores)
    w0 = p_ref[0]
    w1 = p_ref[1]
    b = p_ref[2]
    # Pure VPU path: sublane selects + two scalar-broadcast FMAs; no MXU fill/drain.
    o_ref[...] = x_ref[0:1, :] * w0 + x_ref[1:2, :] * w1 + b


def _forward_impl(x, params):
    """Equivalent of MyNet.forward: torch.nn.Linear(2, 1).

    x:      (N, 2) float32
    params: (3,)   float32 -- [weight[0,0], weight[0,1], bias[0]], built once at init
    returns (N, 1) float32
    """
    n, in_f = x.shape
    # Static shape guards: the kernel hard-codes Linear(2, 1).
    assert in_f == IN_F, f"expected {IN_F} input features, got {in_f}"
    assert params.shape == (IN_F + OUT_F,), f"expected params shape ({IN_F + OUT_F},)"

    # Re-layout so the batch dim sits on the 128-lane axis: (N, 2) -> (2, N).
    x_t = x.T

    if n >= TILE_N and n % TILE_N == 0:
        # Large-N path: tile the lane-dense batch axis, parallel grid (megacore-able).
        out_t = pl.pallas_call(
            linear_kernel,
            out_shape=jax.ShapeDtypeStruct((OUT_F, n), x.dtype),
            grid=(n // TILE_N,),
            in_specs=[
                pl.BlockSpec((IN_F, TILE_N), lambda i: (0, i)),        # x tiles (VMEM)
                pl.BlockSpec(memory_space=pltpu.MemorySpace.SMEM),     # params (scalars)
            ],
            out_specs=pl.BlockSpec((OUT_F, TILE_N), lambda i: (0, i)),
            compiler_params=pltpu.CompilerParams(
                dimension_semantics=("parallel",)),
        )(x_t, params)
    else:
        # Small-N path: whole arrays resident, gridless -> no per-step pipeline overhead.
        out_t = pl.pallas_call(
            linear_kernel,
            out_shape=jax.ShapeDtypeStruct((OUT_F, n), x.dtype),
            in_specs=[
                pl.BlockSpec(memory_space=pltpu.MemorySpace.VMEM),     # x (2, N)
                pl.BlockSpec(memory_space=pltpu.MemorySpace.SMEM),     # params (scalars)
            ],
            out_specs=pl.BlockSpec(memory_space=pltpu.MemorySpace.VMEM),
        )(x_t, params)

    # (1, N) -> (N, 1) back in the wrapper (layout plumbing, not compute).
    return out_t.reshape(n, OUT_F)


mynet_forward = jax.jit(_forward_impl)


if __name__ == "__main__":
    key = jax.random.PRNGKey(0)
    kx, kw, kb, kx2 = jax.random.split(key, 4)

    N = 8

    # Deterministic parameter init mimicking torch.nn.Linear default
    # (uniform in [-1/sqrt(in_features), 1/sqrt(in_features)]).
    bound = 1.0 / (IN_F ** 0.5)
    weight = jax.random.uniform(kw, (OUT_F, IN_F), jnp.float32, -bound, bound)  # torch (out, in)
    bias = jax.random.uniform(kb, (OUT_F,), jnp.float32, -bound, bound)

    # One-time parameter re-layout + merge into a single SMEM operand [w0, w1, b].
    params = jnp.concatenate([weight.reshape(IN_F), bias]).astype(jnp.float32)

    # Small-N (gridless) path.
    x = jax.random.normal(kx, (N, IN_F), jnp.float32)
    out = jax.block_until_ready(mynet_forward(x, params))
    ref = x @ weight.T + bias
    assert out.shape == (N, OUT_F)
    assert jnp.allclose(out, ref, atol=1e-5, rtol=1e-5)

    # Also exercise the tiled (grid) path at a modest N.
    N2 = 2 * TILE_N
    x2 = jax.random.normal(kx2, (N2, IN_F), jnp.float32)
    out2 = jax.block_until_ready(mynet_forward(x2, params))
    ref2 = x2 @ weight.T + bias
    assert out2.shape == (N2, OUT_F)
    assert jnp.allclose(out2, ref2, atol=1e-5, rtol=1e-5)

    # TODO(synk): Adam optimizer / MSELoss from __init__ are training machinery,
    # not part of forward, so they are intentionally not implemented here.
    print("KERNEL_OK")
</pallas_src>

<mosaic_0001>
module attributes {stable_mosaic.version = 11 : i64} {
  func.func @linear_kernel(%arg0: memref<2x8xf32, #tpu.memory_space<vmem>>, %arg1: memref<3xf32, #tpu.memory_space<smem>>, %arg2: memref<1x8xf32, #tpu.memory_space<vmem>>) attributes {dimension_semantics = [], scalar_prefetch = 0 : i64, scratch_operands = 0 : i64, tpu.core_type = #tpu.core_type<tc>} {
    %c0 = arith.constant 0 : index
    %0 = memref.load %arg1[%c0] : memref<3xf32, #tpu.memory_space<smem>>
    %c1 = arith.constant 1 : index
    %1 = memref.load %arg1[%c1] : memref<3xf32, #tpu.memory_space<smem>>
    %c2 = arith.constant 2 : index
    %2 = memref.load %arg1[%c2] : memref<3xf32, #tpu.memory_space<smem>>
    %c0_0 = arith.constant 0 : index
    %c0_1 = arith.constant 0 : index
    %3 = vector.load %arg0[%c0_0, %c0_1] : memref<2x8xf32, #tpu.memory_space<vmem>>, vector<1x8xf32>
    %4 = vector.broadcast %0 : f32 to vector<1x8xf32>
    %5 = arith.mulf %3, %4 : vector<1x8xf32>
    %c1_2 = arith.constant 1 : index
    %c0_3 = arith.constant 0 : index
    %6 = vector.load %arg0[%c1_2, %c0_3] : memref<2x8xf32, #tpu.memory_space<vmem>>, vector<1x8xf32>
    %7 = vector.broadcast %1 : f32 to vector<1x8xf32>
    %8 = arith.mulf %6, %7 : vector<1x8xf32>
    %9 = arith.addf %5, %8 : vector<1x8xf32>
    %10 = vector.broadcast %2 : f32 to vector<1x8xf32>
    %11 = arith.addf %9, %10 : vector<1x8xf32>
    %c0_4 = arith.constant 0 : index
    %c0_5 = arith.constant 0 : index
    %12 = vector.load %arg2[%c0_4, %c0_5] : memref<1x8xf32, #tpu.memory_space<vmem>>, vector<1x8xf32>
    tpu.vector_store %arg2[%c0_4, %c0_5], %11 {strides = array<i32>} : memref<1x8xf32, #tpu.memory_space<vmem>>, vector<1x8xf32>,
    return
  }
}

</mosaic_0001>

<llo_original>
// kernel: _forward_impl.1
$region0: #{_forward_impl.1}
  #allocation0 [shape = 'u32[]', space=smem, size = 0x4, offset = 0x4, fixed_abs, tag = 'smem constant byte address 0x4 - core index']
  #allocation1 [shape = 'u32[144,128]{1,0:T(1,128)}', space=vmem, size = 0x12000, scoped, tag = 'internal scratch']
  %s0 = inlined_call_operand.hbm [shape: f32[2,8], index: 0, kind: input, shape index: {}]
  %s1 = inlined_call_operand.vmem [shape: f32[3], index: 1, kind: input, shape index: {}]
  %s2 = inlined_call_operand.hbm [shape: f32[1,8], index: 2, kind: output, shape index: {}]
  %s3 = sld [smem:[#allocation0]]
  $region26: #{_forward_impl.1} parent=0
    _
  %s5 = ssub.s32 1, %s3
  %s6 = scalar_select 0, %s5, %s3
  $region1: #{_forward_impl.1} parent=0
    #allocation2 [shape = 'u8[1024]{0}', space=vmem, size = 0x400, scoped, tag = 'input window, operand 0, single buffered']
    #allocation3 [shape = 's32[1]{0}', space=sflag, size = 0x4, scoped, tag = 'scoped memory for _forward_impl.1']
    #allocation4 [shape = 's32[1]{0}', space=sflag, size = 0x4, scoped, tag = 'scoped memory for _forward_impl.1']
    #allocation5 [shape = 's32[1]{0}', space=sflag, size = 0x4, scoped, tag = 'scoped memory for _forward_impl.1']
    #allocation6 [shape = 'u8[512]{0}', space=smem, size = 0x200, scoped, tag = 'input window, operand 1, single buffered']
    #allocation7 [shape = 'u8[512]{0}', space=vmem, size = 0x400, scoped, tag = 'output window, operand 0, single buffered']
    %7 = vsyncpa [#allocation3], 0
    %8 = vsyncpa [#allocation5], 0
    %9 = vsyncpa [#allocation4], 0
    // Predicated region
    $region2: #{_forward_impl.1} parent=1 // pred_check
      _
    $region3: #{_forward_impl.1} parent=1 // pred_check_branch
      %11 = sbr.rel (0) target = $region5
    $region4: #{_forward_impl.1} parent=1 // pred_region
      %s13 = ssub.s32 32, 32
      %14 = vsyncadd [#allocation3], %s13
      %s16 = sshll.u32 [#allocation2], 4
      %s17 = int_to_ptr.vmem [resolvable:$true] %s16
      %19 = dma.hbm_to_vmem [thread:$0]  %s0, 32, %s17, [#allocation3]
    $region5: #{_forward_impl.1} parent=1 // pred_fallthru
      _
    // Predicated region
    $region6: #{_forward_impl.1} parent=1 // pred_check
      _
    $region7: #{_forward_impl.1} parent=1 // pred_check_branch
      %21 = sbr.rel (0) target = $region9
    $region8: #{_forward_impl.1} parent=1 // pred_region
      %s23 = ssub.s32 16, 16
      %24 = vsyncadd [#allocation5], %s23
      %s26 = sshll.u32 %s1, 4
      %s27 = int_to_ptr.vmem [resolvable:$true] %s26
      %29 = dma.vmem_to_smem %s27, 16, [#allocation6], [#allocation5]
    $region9: #{_forward_impl.1} parent=1 // pred_fallthru
      _
    // Predicated region
    $region10: #{_forward_impl.1} parent=1 // pred_check
      _
    $region11: #{_forward_impl.1} parent=1 // pred_check_branch
      %31 = sbr.rel (0) target = $region13
    $region12: #{_forward_impl.1} parent=1 // pred_region
      %32 = dma.done [#allocation3], 32
    $region13: #{_forward_impl.1} parent=1 // pred_fallthru
      _
    // Predicated region
    $region14: #{_forward_impl.1} parent=1 // pred_check
      _
    $region15: #{_forward_impl.1} parent=1 // pred_check_branch
      %34 = sbr.rel (0) target = $region17
    $region16: #{_forward_impl.1} parent=1 // pred_region
      %35 = dma.done [#allocation5], 16
    $region17: #{_forward_impl.1} parent=1 // pred_fallthru
      _
    %36 = sfence
    %s37 = sld [smem:[#allocation6]]
    %s38 = sld [smem:[#allocation6 + $0x1]]
    %s39 = sld [smem:[#allocation6 + $0x2]]
    %v40 = vld [vmem:[#allocation2] sm:$0x1]
    %v41 = vstv %s37
    %v42 = vmul.f32 %v40, %v41
    %v43 = vld [vmem:[#allocation2 + $0x1] sm:$0x1]
    %v44 = vstv %s38
    %v45 = vmul.f32 %v43, %v44
    %v46 = vadd.f32 %v42, %v45
    %v47 = vstv %s39
    %v48 = vadd.f32 %v46, %v47
    %vm49 = vcmask 57344
    %50 = vst.msk [vmem:[#allocation7] sm:$0x1] %vm49, %v48
    // Predicated region
    $region18: #{_forward_impl.1} parent=1 // pred_check
      _
    $region19: #{_forward_impl.1} parent=1 // pred_check_branch
      %52 = sbr.rel (0) target = $region21
    $region20: #{_forward_impl.1} parent=1 // pred_region
      %s54 = ssub.s32 16, 16
      %55 = vsyncadd [#allocation4], %s54
      %s57 = sshll.u32 [#allocation7], 4
      %s58 = int_to_ptr.vmem [resolvable:$true] %s57
      %60 = dma.vmem_to_hbm [thread:$0]  %s58, 16, %s2, [#allocation4]
    $region21: #{_forward_impl.1} parent=1 // pred_fallthru
      _
    // Predicated region
    $region22: #{_forward_impl.1} parent=1 // pred_check
      _
    $region23: #{_forward_impl.1} parent=1 // pred_check_branch
      %62 = sbr.rel (0) target = $region25
    $region24: #{_forward_impl.1} parent=1 // pred_region
      %63 = dma.done [#allocation4], 16
    $region25: #{_forward_impl.1} parent=1 // pred_fallthru
      _
    %64 = vsyncpa [#allocation3], 1
    %65 = vsyncpa [#allocation4], 1
    %66 = vsyncpa [#allocation5], 1

</llo_original>
